<compile_context>
chip_gen: v6e
topology: v6e:2x2x1
jax: 0.10.0
libtpu: 0.0.40
codegen_flags: <defaults>
</compile_context>

<pallas_src>
import functools
import math

import jax
import jax.numpy as jnp
from jax.experimental import pallas as pl
from jax.experimental.pallas import tpu as pltpu


def _build_pe_table(d_model: int, max_len: int = 5000) -> jnp.ndarray:
    """Deterministic buffer init, identical to the PyTorch __init__ (fp32)."""
    position = jnp.arange(0, max_len, dtype=jnp.float32)[:, None]          # (max_len, 1)
    div_term = jnp.exp(
        jnp.arange(0, d_model, 2, dtype=jnp.float32)
        * (-math.log(10000.0) / d_model)
    )                                                                       # (d_model/2,)
    angles = position * div_term                                            # (max_len, d_model/2)
    pe = jnp.zeros((max_len, d_model), dtype=jnp.float32)
    pe = pe.at[:, 0::2].set(jnp.sin(angles))
    pe = pe.at[:, 1::2].set(jnp.cos(angles))
    return pe                                                               # (max_len, d_model)


def _broadcast_pe(pe_table: jnp.ndarray, S: int, B: int, dtype) -> jnp.ndarray:
    """pe[:S] broadcast over batch and flattened to (S, B*D).

    NOTE: casting pe to x.dtype matches the fp32 reference exactly; for
    bf16/fp16 inputs PyTorch would promote the add to fp32 -- keep pe fp32 and
    cast only the output if bit-accuracy vs. that behavior matters.
    """
    D = pe_table.shape[-1]
    pe_rows = pe_table[:S, :]
    return (
        jnp.broadcast_to(pe_rows[:, None, :], (S, B, D))
        .reshape(S, B * D)
        .astype(dtype)
    )


def _choose_seq_tile(S: int, row_bytes: int) -> int:
    """Largest sublane-aligned seq tile with ~4 MiB payload (<= 2048 rows)."""
    target_tile_bytes = 4 * 1024 * 1024
    ts = min(S, max(8, target_tile_bytes // max(row_bytes, 1)), 2048)
    if ts >= S:
        return S                       # full extent: always a legal block shape
    return max(8, (ts // 8) * 8)       # second-to-last block dim: multiple of 8


def _pe_add_kernel(x_ref, pe_ref, o_ref):
    # Dense same-shape streaming add: 2 vld + 1 vadd + 1 vst per vreg.
    # Deliberately no extra elementwise work (v5e has a single vst slot).
    o_ref[...] = x_ref[...] + pe_ref[...]


def positional_encoding_forward(x: jnp.ndarray, pe_table: jnp.ndarray,
                                *, donate_x: bool = False) -> jnp.ndarray:
    """x: (S, B, D); pe_table: (max_len, D) fp32. Returns x + pe[:S] (broadcast over B)."""
    S, B, D = x.shape
    row = B * D
    itemsize = jnp.dtype(x.dtype).itemsize

    x2 = x.reshape(S, row)                             # contiguous reshape: no HBM copy
    pe_flat = _broadcast_pe(pe_table, S, B, x.dtype)   # precomputable, like the buffer

    ts = _choose_seq_tile(S, row * itemsize)
    grid = (pl.cdiv(S, ts),)

    out = pl.pallas_call(
        _pe_add_kernel,
        out_shape=jax.ShapeDtypeStruct((S, row), x.dtype),
        grid_spec=pltpu.PrefetchScalarGridSpec(
            num_scalar_prefetch=0,
            grid=grid,
            in_specs=[
                pl.BlockSpec((ts, row), lambda i: (i, 0)),   # x tile
                pl.BlockSpec((ts, row), lambda i: (i, 0)),   # pe tile
            ],
            out_specs=pl.BlockSpec((ts, row), lambda i: (i, 0)),
        ),
        compiler_params=pltpu.CompilerParams(
            dimension_semantics=("parallel",),       # shard seq tiles across v7x TCs
            vmem_limit_bytes=48 * 1024 * 1024,       # headroom below v7x 64 MiB physical
        ),
        cost_estimate=pl.CostEstimate(
            flops=S * row,
            transcendentals=0,
            bytes_accessed=3 * S * row * itemsize,
        ),
        # Pure in-place-able add: alias x -> out when the caller donates x.
        input_output_aliases={0: 0} if donate_x else {},
    )(x2, pe_flat)

    return out.reshape(S, B, D)


if __name__ == "__main__":
    # --- small shapes consistent with the module: seq=8, batch=2, d_model=32 ---
    S, B, D = 8, 2, 32
    key = jax.random.PRNGKey(0)
    x = jax.random.normal(key, (S, B, D), dtype=jnp.float32)
    pe_table = _build_pe_table(d_model=D, max_len=5000)

    out = jax.block_until_ready(positional_encoding_forward(x, pe_table))
    ref = x + pe_table[:S, None, :]
    assert out.shape == (S, B, D)
    assert jnp.allclose(out, ref, atol=1e-6), "mismatch vs reference (small)"

    # Donated / in-place path (input_output_aliases) -- correctness check.
    fwd_inplace = jax.jit(
        functools.partial(positional_encoding_forward, donate_x=True),
        donate_argnums=(0,),
    )
    x_copy = x + 0.0                      # fresh buffer we are allowed to donate
    out_inplace = jax.block_until_ready(fwd_inplace(x_copy, pe_table))
    assert jnp.allclose(out_inplace, ref, atol=1e-6), "mismatch vs reference (donated)"

    # --- larger shape: multi-step pipelined grid, ragged last tile, lane-dense rows ---
    S2, B2, D2 = 5000, 2, 128             # B2*D2 = 256 (multiple of 128); ts=2048 -> grid (3,)
    x_big = jax.random.normal(jax.random.PRNGKey(1), (S2, B2, D2), dtype=jnp.float32)
    pe_table_big = _build_pe_table(d_model=D2, max_len=5000)
    out_big = jax.block_until_ready(positional_encoding_forward(x_big, pe_table_big))
    ref_big = x_big + pe_table_big[:S2, None, :]
    assert jnp.allclose(out_big, ref_big, atol=1e-6), "mismatch vs reference (large)"

    print("KERNEL_OK")
</pallas_src>

<mosaic_0001>
module attributes {stable_mosaic.version = 11 : i64} {
  func.func @_pe_add_kernel(%arg0: i32, %arg1: memref<8x64xf32, #tpu.memory_space<vmem>>, %arg2: memref<8x64xf32, #tpu.memory_space<vmem>>, %arg3: memref<8x64xf32, #tpu.memory_space<vmem>>) attributes {dimension_semantics = [#tpu.dimension_semantics<parallel>], iteration_bounds = array<i64: 1>, scalar_prefetch = 0 : i64, scratch_operands = 0 : i64, tpu.core_type = #tpu.core_type<tc>, window_params = [{transform_indices = @transform_0, window_bounds = array<i64: 8, 64>}, {transform_indices = @transform_1, window_bounds = array<i64: 8, 64>}, {transform_indices = @transform_2, window_bounds = array<i64: 8, 64>}]} {
    %c0 = arith.constant 0 : index
    %c0_0 = arith.constant 0 : index
    %0 = vector.load %arg1[%c0, %c0_0] : memref<8x64xf32, #tpu.memory_space<vmem>>, vector<8x64xf32>
    %c0_1 = arith.constant 0 : index
    %c0_2 = arith.constant 0 : index
    %1 = vector.load %arg2[%c0_1, %c0_2] : memref<8x64xf32, #tpu.memory_space<vmem>>, vector<8x64xf32>
    %2 = arith.addf %0, %1 : vector<8x64xf32>
    %c0_3 = arith.constant 0 : index
    %c0_4 = arith.constant 0 : index
    %3 = vector.load %arg3[%c0_3, %c0_4] : memref<8x64xf32, #tpu.memory_space<vmem>>, vector<8x64xf32>
    tpu.vector_store %arg3[%c0_3, %c0_4], %2 {strides = array<i32>} : memref<8x64xf32, #tpu.memory_space<vmem>>, vector<8x64xf32>,
    return
  }
  func.func @transform_0(%arg0: i32) -> (i32, i32) {
    %c0_i32 = arith.constant 0 : i32
    %c0_i32_0 = arith.constant 0 : i32
    return %arg0, %c0_i32 : i32, i32
  }
  func.func @transform_1(%arg0: i32) -> (i32, i32) {
    %c0_i32 = arith.constant 0 : i32
    %c0_i32_0 = arith.constant 0 : i32
    return %arg0, %c0_i32 : i32, i32
  }
  func.func @transform_2(%arg0: i32) -> (i32, i32) {
    %c0_i32 = arith.constant 0 : i32
    %c0_i32_0 = arith.constant 0 : i32
    return %arg0, %c0_i32 : i32, i32
  }
}

</mosaic_0001>

<llo_original>
// kernel: tpu_custom_call.1
$region0: #{tpu_custom_call.1}
  #allocation0 [shape = 'u32[]', space=smem, size = 0x4, offset = 0x4, fixed_abs, tag = 'smem constant byte address 0x4 - core index']
  #allocation1 [shape = 'u32[144,128]{1,0:T(1,128)}', space=vmem, size = 0x12000, scoped, tag = 'internal scratch']
  %s0 = inlined_call_operand.hbm [shape: f32[8,64], index: 0, kind: input, shape index: {}]
  %s1 = inlined_call_operand.hbm [shape: f32[8,64], index: 1, kind: input, shape index: {}]
  %s2 = inlined_call_operand.hbm [shape: f32[8,64], index: 2, kind: output, shape index: {}]
  %s3 = sld [smem:[#allocation0]]
  $region26: #{tpu_custom_call.1} parent=0
    _
  %s5 = ssub.s32 1, %s3
  %s6 = scalar_select 0, %s5, %s3
  $region1: #{tpu_custom_call.1} parent=0
    #allocation2 [shape = 'u8[4096]{0}', space=vmem, size = 0x1000, scoped, tag = 'input window, operand 0, single buffered']
    #allocation3 [shape = 's32[1]{0}', space=sflag, size = 0x4, scoped, tag = 'scoped memory for tpu_custom_call.1']
    #allocation4 [shape = 's32[1]{0}', space=sflag, size = 0x4, scoped, tag = 'scoped memory for tpu_custom_call.1']
    #allocation5 [shape = 'u8[4096]{0}', space=vmem, size = 0x1000, scoped, tag = 'input window, operand 1, single buffered']
    #allocation6 [shape = 's32[1]{0}', space=sflag, size = 0x4, scoped, tag = 'scoped memory for tpu_custom_call.1']
    #allocation7 [shape = 'u8[4096]{0}', space=vmem, size = 0x1000, scoped, tag = 'output window, operand 0, single buffered']
    %7 = vsyncpa [#allocation3], 0
    %8 = vsyncpa [#allocation6], 0
    %9 = vsyncpa [#allocation4], 0
    // Predicated region
    $region2: #{tpu_custom_call.1} parent=1 // pred_check
      _
    $region3: #{tpu_custom_call.1} parent=1 // pred_check_branch
      %11 = sbr.rel (0) target = $region5
    $region4: #{tpu_custom_call.1} parent=1 // pred_region
      %s13 = ssub.s32 128, 128
      %14 = vsyncadd [#allocation3], %s13
      %s16 = sshll.u32 [#allocation2], 4
      %s17 = int_to_ptr.vmem [resolvable:$true] %s16
      %19 = dma.hbm_to_vmem [thread:$0]  %s0, 128, %s17, [#allocation3]
    $region5: #{tpu_custom_call.1} parent=1 // pred_fallthru
      _
    // Predicated region
    $region6: #{tpu_custom_call.1} parent=1 // pred_check
      _
    $region7: #{tpu_custom_call.1} parent=1 // pred_check_branch
      %21 = sbr.rel (0) target = $region9
    $region8: #{tpu_custom_call.1} parent=1 // pred_region
      %s23 = ssub.s32 128, 128
      %24 = vsyncadd [#allocation6], %s23
      %s26 = sshll.u32 [#allocation5], 4
      %s27 = int_to_ptr.vmem [resolvable:$true] %s26
      %29 = dma.hbm_to_vmem [thread:$0]  %s1, 128, %s27, [#allocation6]
    $region9: #{tpu_custom_call.1} parent=1 // pred_fallthru
      _
    // Predicated region
    $region10: #{tpu_custom_call.1} parent=1 // pred_check
      _
    $region11: #{tpu_custom_call.1} parent=1 // pred_check_branch
      %31 = sbr.rel (0) target = $region13
    $region12: #{tpu_custom_call.1} parent=1 // pred_region
      %32 = dma.done [#allocation3], 128
    $region13: #{tpu_custom_call.1} parent=1 // pred_fallthru
      _
    // Predicated region
    $region14: #{tpu_custom_call.1} parent=1 // pred_check
      _
    $region15: #{tpu_custom_call.1} parent=1 // pred_check_branch
      %34 = sbr.rel (0) target = $region17
    $region16: #{tpu_custom_call.1} parent=1 // pred_region
      %35 = dma.done [#allocation6], 128
    $region17: #{tpu_custom_call.1} parent=1 // pred_fallthru
      _
    %v36 = vld [vmem:[#allocation2] sm:$0xff]
    %v37 = vld [vmem:[#allocation5] sm:$0xff]
    %v38 = vadd.f32 %v36, %v37
    %vm39 = vcmask 523264
    %40 = vst.msk [vmem:[#allocation7] sm:$0xff] %vm39, %v38
    // Predicated region
    $region18: #{tpu_custom_call.1} parent=1 // pred_check
      _
    $region19: #{tpu_custom_call.1} parent=1 // pred_check_branch
      %42 = sbr.rel (0) target = $region21
    $region20: #{tpu_custom_call.1} parent=1 // pred_region
      %s44 = ssub.s32 128, 128
      %45 = vsyncadd [#allocation4], %s44
      %s47 = sshll.u32 [#allocation7], 4
      %s48 = int_to_ptr.vmem [resolvable:$true] %s47
      %50 = dma.vmem_to_hbm [thread:$0]  %s48, 128, %s2, [#allocation4]
    $region21: #{tpu_custom_call.1} parent=1 // pred_fallthru
      _
    // Predicated region
    $region22: #{tpu_custom_call.1} parent=1 // pred_check
      _
    $region23: #{tpu_custom_call.1} parent=1 // pred_check_branch
      %52 = sbr.rel (0) target = $region25
    $region24: #{tpu_custom_call.1} parent=1 // pred_region
      %53 = dma.done [#allocation4], 128
    $region25: #{tpu_custom_call.1} parent=1 // pred_fallthru
      _
    %54 = vsyncpa [#allocation3], 1
    %55 = vsyncpa [#allocation6], 1
    %56 = vsyncpa [#allocation4], 1

</llo_original>
